<compile_context>
chip_gen: v5e
topology: v5e:2x2
jax: 0.10.0
libtpu: 0.0.40
codegen_flags: <defaults>
</compile_context>

<pallas_src>
import jax
import jax.numpy as jnp
from jax.experimental import pallas as pl
from jax.experimental.pallas import tpu as pltpu


def _add_conv1x1_kernel(a_ref, b_ref, w_ref, o_ref):
    # a_ref, b_ref: (Cin, M) f32 ; w_ref: (tCout, Cin) bf16 ; o_ref: (tCout, M) bf16
    x = (a_ref[...] + b_ref[...]).astype(jnp.bfloat16)          # fused residual add
    o_ref[...] = jnp.dot(
        w_ref[...], x, preferred_element_type=jnp.float32        # MXU, f32 accumulate
    ).astype(o_ref.dtype)


def prepare_conv_weight(weight):
    """One-time parameter prep: (Cout, Cin, 1, 1) f32 -> (Cout, Cin) bf16."""
    Cout, Cin = weight.shape[0], weight.shape[1]
    return weight.reshape(Cout, Cin).astype(jnp.bfloat16)


def add_conv1x1(x410, x396, w2d_bf16, *, block_cout=480, out_dtype=jnp.bfloat16):
    """x410, x396: NCHW f32 (N, Cin, H, W) with N == 1.
    w2d_bf16: prepared weight (Cout, Cin) bf16 (see prepare_conv_weight).
    Returns NCHW (N, Cout, H, W) in `out_dtype` (bf16 by default; the consumer
    in EfficientNet is a BatchNorm, which tolerates bf16)."""
    N, Cin, H, W = x410.shape
    assert N == 1, "free-reshape (Cin, H*W) path requires N == 1"
    Cout = w2d_bf16.shape[0]
    assert Cout % block_cout == 0 and block_cout % 8 == 0
    M = H * W  # NCHW row-major with N==1 -> (Cin, H*W) is a free reshape

    a = x410.reshape(Cin, M)
    b = x396.reshape(Cin, M)

    out_bytes = Cout * M * jnp.dtype(out_dtype).itemsize
    cost = pl.CostEstimate(
        flops=2 * M * Cin * Cout,
        transcendentals=0,
        bytes_accessed=2 * Cin * M * 4 + Cout * Cin * 2 + out_bytes,
    )

    grid = (Cout // block_cout,)

    out = pl.pallas_call(
        _add_conv1x1_kernel,
        out_shape=jax.ShapeDtypeStruct((Cout, M), out_dtype),
        grid=grid,
        in_specs=[
            pl.BlockSpec((Cin, M), lambda i: (0, 0)),          # activations resident
            pl.BlockSpec((Cin, M), lambda i: (0, 0)),
            pl.BlockSpec((block_cout, Cin), lambda i: (i, 0)),  # weight block per step
        ],
        out_specs=pl.BlockSpec((block_cout, M), lambda i: (i, 0)),
        compiler_params=pltpu.CompilerParams(
            dimension_semantics=("parallel",),                  # v7x: split across 2 TCs
        ),
        cost_estimate=cost,
    )(a, b, w2d_bf16)

    # (Cout, M) -> (1, Cout, H, W): free reshape for N == 1.
    return out.reshape(N, Cout, H, W)


if __name__ == "__main__":
    key = jax.random.PRNGKey(0)
    k1, k2, k3 = jax.random.split(key, 3)

    N, Cin, H, W = 1, 160, 14, 14
    Cout = 960

    x410 = jax.random.normal(k1, (N, Cin, H, W), dtype=jnp.float32)
    x396 = jax.random.normal(k2, (N, Cin, H, W), dtype=jnp.float32)
    # Conv2d(160, 960, k=1, bias=False) weight, deterministic init.
    weight = jax.random.normal(k3, (Cout, Cin, 1, 1), dtype=jnp.float32) * 0.05

    # Hoisted, one-time weight layout/dtype prep (parameter-load path).
    w2d = prepare_conv_weight(weight)

    out = add_conv1x1(x410, x396, w2d)
    out = jax.block_until_ready(out)

    assert out.shape == (N, Cout, H, W)
    assert out.dtype == jnp.bfloat16

    # Reference with the same bf16 operand rounding as the kernel's MXU path,
    # accumulated in f32 (tight check on the kernel itself).
    x_sum_bf16 = (x410 + x396).reshape(Cin, H * W).astype(jnp.bfloat16).astype(jnp.float32)
    ref = jnp.dot(w2d.astype(jnp.float32), x_sum_bf16).reshape(N, Cout, H, W)

    out_f32 = out.astype(jnp.float32)
    max_err = float(jnp.max(jnp.abs(out_f32 - ref)))
    assert jnp.allclose(out_f32, ref, atol=2e-2, rtol=2e-2), max_err

    # Loose sanity check vs. the full-f32 conv (PyTorch semantics).
    ref_f32 = jnp.einsum("nchw,oc->nohw", x410 + x396, weight[:, :, 0, 0])
    assert jnp.allclose(out_f32, ref_f32, atol=8e-2, rtol=8e-2), float(
        jnp.max(jnp.abs(out_f32 - ref_f32))
    )

    print("KERNEL_OK")
</pallas_src>

<mosaic_0001>
module attributes {stable_mosaic.version = 11 : i64} {
  func.func @_add_conv1x1_kernel(%arg0: i32, %arg1: memref<160x196xf32, #tpu.memory_space<vmem>>, %arg2: memref<160x196xf32, #tpu.memory_space<vmem>>, %arg3: memref<480x160xbf16, #tpu.memory_space<vmem>>, %arg4: memref<480x196xbf16, #tpu.memory_space<vmem>>) attributes {dimension_semantics = [#tpu.dimension_semantics<parallel>], iteration_bounds = array<i64: 2>, scalar_prefetch = 0 : i64, scratch_operands = 0 : i64, tpu.core_type = #tpu.core_type<tc>, window_params = [{pipeline_mode = #tpu.pipeline_mode<synchronous>, transform_indices = @transform_0, window_bounds = array<i64: 160, 196>}, {pipeline_mode = #tpu.pipeline_mode<synchronous>, transform_indices = @transform_1, window_bounds = array<i64: 160, 196>}, {transform_indices = @transform_2, window_bounds = array<i64: 480, 160>}, {transform_indices = @transform_3, window_bounds = array<i64: 480, 196>}]} {
    %c0 = arith.constant 0 : index
    %c0_0 = arith.constant 0 : index
    %0 = vector.load %arg1[%c0, %c0_0] : memref<160x196xf32, #tpu.memory_space<vmem>>, vector<160x196xf32>
    %c0_1 = arith.constant 0 : index
    %c0_2 = arith.constant 0 : index
    %1 = vector.load %arg2[%c0_1, %c0_2] : memref<160x196xf32, #tpu.memory_space<vmem>>, vector<160x196xf32>
    %2 = arith.addf %0, %1 : vector<160x196xf32>
    %3 = arith.truncf %2 : vector<160x196xf32> to vector<160x196xbf16>
    %c0_3 = arith.constant 0 : index
    %c0_4 = arith.constant 0 : index
    %4 = vector.load %arg3[%c0_3, %c0_4] : memref<480x160xbf16, #tpu.memory_space<vmem>>, vector<480x160xbf16>
    %cst = arith.constant dense<0.000000e+00> : vector<480x196xf32>
    %5 = tpu.matmul %4, %3, %cst {dimension_numbers = #tpu.dot_dimension_numbers<[1], [0], [0], [1], [0, 0, 1, 1], [], []>} : vector<480x160xbf16>, vector<160x196xbf16>, vector<480x196xf32> -> vector<480x196xf32>
    %6 = arith.truncf %5 : vector<480x196xf32> to vector<480x196xbf16>
    %c0_5 = arith.constant 0 : index
    %c0_6 = arith.constant 0 : index
    %7 = vector.load %arg4[%c0_5, %c0_6] : memref<480x196xbf16, #tpu.memory_space<vmem>>, vector<480x196xbf16>
    tpu.vector_store %arg4[%c0_5, %c0_6], %6 {strides = array<i32>} : memref<480x196xbf16, #tpu.memory_space<vmem>>, vector<480x196xbf16>,
    return
  }
  func.func @transform_0(%arg0: i32) -> (i32, i32) {
    %c0_i32 = arith.constant 0 : i32
    %c0_i32_0 = arith.constant 0 : i32
    %c0_i32_1 = arith.constant 0 : i32
    return %c0_i32, %c0_i32_0 : i32, i32
  }
  func.func @transform_1(%arg0: i32) -> (i32, i32) {
    %c0_i32 = arith.constant 0 : i32
    %c0_i32_0 = arith.constant 0 : i32
    %c0_i32_1 = arith.constant 0 : i32
    return %c0_i32, %c0_i32_0 : i32, i32
  }
  func.func @transform_2(%arg0: i32) -> (i32, i32) {
    %c0_i32 = arith.constant 0 : i32
    %c0_i32_0 = arith.constant 0 : i32
    return %arg0, %c0_i32 : i32, i32
  }
  func.func @transform_3(%arg0: i32) -> (i32, i32) {
    %c0_i32 = arith.constant 0 : i32
    %c0_i32_0 = arith.constant 0 : i32
    return %arg0, %c0_i32 : i32, i32
  }
}

</mosaic_0001>

<llo_original>
// kernel: tpu_custom_call.1
$region0: #{tpu_custom_call.1}
  #allocation0 [shape = 'u32[]', space=smem, size = 0x4, offset = 0x4, fixed_abs, tag = 'smem constant byte address 0x4 - core index']
  #allocation1 [shape = 'u32[72,128]{1,0:T(1,128)}', space=vmem, size = 0x9000, scoped, tag = 'internal scratch']
  %s0 = inlined_call_operand.vmem [shape: f32[160,196], index: 0, kind: input, shape index: {}]
  %s1 = inlined_call_operand.vmem [shape: f32[160,196], index: 1, kind: input, shape index: {}]
  %s2 = inlined_call_operand.vmem [shape: bf16[960,160], index: 2, kind: input, shape index: {}]
  %s3 = inlined_call_operand.vmem [shape: bf16[960,196], index: 3, kind: output, shape index: {}]
  %s4 = sld [smem:[#allocation0]]
  $region45: #{tpu_custom_call.1} parent=0
    _
  %s6 = ssub.s32 1, %s4
  %s7 = scalar_select 0, %s6, %s4
  loop: start=0, step=1, limit=4
  $region2: #{tpu_custom_call.1} parent=0 // loop_pre_header
    _
  $region3: #{tpu_custom_call.1} parent=0 // loop_header
    %s9 = sphi 0, %s13
    %p10 = scmp.ge.s32.totalorder %s9, 4
    %s17 = sphi 0, %s17
    %s19 = sphi 0, %s17
    %s20 = sphi 0, %s19
    %s34 = sphi 0, %s20
    %s38 = sphi 0, %s38
    %s40 = sphi 0, %s38
    %s41 = sphi 0, %s40
    %s55 = sphi 0, %s41
    %s61 = sphi 0, %s63
    %s64 = sphi 0, %s61
    %s65 = sphi 0, %s64
    %s81 = sphi 0, %s65
    %s87 = sphi 0, %s89
    %s90 = sphi 0, %s87
    %s91 = sphi 0, %s90
    %s107 = sphi 0, %s91
  $region4: #{tpu_custom_call.1} parent=0 // loop_header_branch
    %12 = sbr.rel (%p10) target = $region8
  $region5: #{tpu_custom_call.1} parent=0 // loop_body
    %s14 = ssub.s32 %s9, 1
    %s15 = ssub.s32 %s9, 2
    %s16 = sadd.s32 %s9, 1
    %s18 = sadd.s32 %s17, 1
    %p21 = scmp.eq.s32.totalorder %s9, 1
    %p22 = scmp.ne.s32.totalorder %s17, %s19
    %p23 = scmp.eq.s32.totalorder %s9, 0
    %p24 = por %p22, %p23
    %p25 = scmp.ne.s32.totalorder %s17, %s19
    %p26 = scmp.eq.s32.totalorder %s14, 1
    %p27 = por %p25, %p26
    %p28 = scmp.ne.s32.totalorder %s19, %s20
    %p29 = scmp.eq.s32.totalorder %s14, 0
    %p30 = por %p28, %p29
    %p31 = scmp.ne.s32.totalorder %s19, %s20
    %p32 = scmp.eq.s32.totalorder %s15, 1
    %p33 = por %p31, %p32
    %p35 = scmp.ne.s32.totalorder %s20, %s34
    %p36 = scmp.eq.s32.totalorder %s15, 0
    %p37 = por %p35, %p36
    %s39 = sadd.s32 %s38, 1
    %p42 = scmp.eq.s32.totalorder %s9, 1
    %p43 = scmp.ne.s32.totalorder %s38, %s40
    %p44 = scmp.eq.s32.totalorder %s9, 0
    %p45 = por %p43, %p44
    %p46 = scmp.ne.s32.totalorder %s38, %s40
    %p47 = scmp.eq.s32.totalorder %s14, 1
    %p48 = por %p46, %p47
    %p49 = scmp.ne.s32.totalorder %s40, %s41
    %p50 = scmp.eq.s32.totalorder %s14, 0
    %p51 = por %p49, %p50
    %p52 = scmp.ne.s32.totalorder %s40, %s41
    %p53 = scmp.eq.s32.totalorder %s15, 1
    %p54 = por %p52, %p53
    %p56 = scmp.ne.s32.totalorder %s41, %s55
    %p57 = scmp.eq.s32.totalorder %s15, 0
    %p58 = por %p56, %p57
    %s59 = ssub.s32 %s9, %s16
    %p60 = scmp.eq.s32.totalorder %s59, 0
    %s62 = sadd.s32 %s61, 1
    %s63 = scalar_select %p60, %s61, %s62
    %p66 = pneg %p60
    %p67 = scmp.eq.s32.totalorder %s9, 1
    %p68 = por %p66, %p67
    %p69 = scmp.ne.s32.totalorder %s61, %s64
    %p70 = scmp.eq.s32.totalorder %s9, 0
    %p71 = por %p69, %p70
    %p72 = scmp.ne.s32.totalorder %s61, %s64
    %p73 = scmp.eq.s32.totalorder %s14, 1
    %p74 = por %p72, %p73
    %p75 = scmp.ne.s32.totalorder %s64, %s65
    %p76 = scmp.eq.s32.totalorder %s14, 0
    %p77 = por %p75, %p76
    %p78 = scmp.ne.s32.totalorder %s64, %s65
    %p79 = scmp.eq.s32.totalorder %s15, 1
    %p80 = por %p78, %p79
    %p82 = scmp.ne.s32.totalorder %s65, %s81
    %p83 = scmp.eq.s32.totalorder %s15, 0
    %p84 = por %p82, %p83
    %s85 = ssub.s32 %s9, %s16
    %p86 = scmp.eq.s32.totalorder %s85, 0
    %s88 = sadd.s32 %s87, 1
    %s89 = scalar_select %p86, %s87, %s88
    %p92 = pneg %p86
    %p93 = scmp.eq.s32.totalorder %s9, 1
    %p94 = por %p92, %p93
    %p95 = scmp.ne.s32.totalorder %s87, %s90
    %p96 = scmp.eq.s32.totalorder %s9, 0
    %p97 = por %p95, %p96
    %p98 = scmp.ne.s32.totalorder %s87, %s90
    %p99 = scmp.eq.s32.totalorder %s14, 1
    %p100 = por %p98, %p99
    %p101 = scmp.ne.s32.totalorder %s90, %s91
    %p102 = scmp.eq.s32.totalorder %s14, 0
    %p103 = por %p101, %p102
    %p104 = scmp.ne.s32.totalorder %s90, %s91
    %p105 = scmp.eq.s32.totalorder %s15, 1
    %p106 = por %p104, %p105
    %p108 = scmp.ne.s32.totalorder %s91, %s107
    %p109 = scmp.eq.s32.totalorder %s15, 0
    %p110 = por %p108, %p109
    %p111 = scmp.le.s32.totalorder 1, %s9
    %p112 = scmp.lt.s32.totalorder %s9, 3
    %p113 = pnand %p111, %p112
    %p114 = pneg %p113
    // Predicated region
    $region9: #{tpu_custom_call.1} parent=5 // pred_check
      _
    $region10: #{tpu_custom_call.1} parent=5 // pred_check_branch
      %116 = sbr.rel (%p113) target = $region12
    $region11: #{tpu_custom_call.1} parent=5 // pred_region
      %s117 = ssub.s32 %s9, 1
      // Predicated region
      $region13: #{tpu_custom_call.1} parent=11 // pred_check
        %p118 = pneg %p30
      $region14: #{tpu_custom_call.1} parent=11 // pred_check_branch
        %120 = sbr.rel (%p118) target = $region16
      $region15: #{tpu_custom_call.1} parent=11 // pred_region
        _
      $region16: #{tpu_custom_call.1} parent=11 // pred_fallthru
        _
      // Predicated region
      $region17: #{tpu_custom_call.1} parent=11 // pred_check
        %p121 = pneg %p51
      $region18: #{tpu_custom_call.1} parent=11 // pred_check_branch
        %123 = sbr.rel (%p121) target = $region20
      $region19: #{tpu_custom_call.1} parent=11 // pred_region
        _
      $region20: #{tpu_custom_call.1} parent=11 // pred_fallthru
        _
    $region12: #{tpu_custom_call.1} parent=5 // pred_fallthru
      _
    %p124 = scmp.lt.s32.totalorder %s9, 2
    // Predicated region
    $region21: #{tpu_custom_call.1} parent=5 // pred_check
      %p125 = pneg %p124
    $region22: #{tpu_custom_call.1} parent=5 // pred_check_branch
      %127 = sbr.rel (%p125) target = $region24
    $region23: #{tpu_custom_call.1} parent=5 // pred_region
      // Predicated region
      $region25: #{tpu_custom_call.1} parent=23 // pred_check
        %p128 = pneg %p71
      $region26: #{tpu_custom_call.1} parent=23 // pred_check_branch
        %130 = sbr.rel (%p128) target = $region28
      $region27: #{tpu_custom_call.1} parent=23 // pred_region
        %s131 = smul.u32 60, %s9
        %p132 = scmp.lt.s32.totalorder %s131, 119
        %s133 = scalar_select %p132, %s131, 119
        %s134 = smul.addr %s133, 2
        %s135 = smul.addr %s134, 4
        %s136 = scalar_lea.vmem %s2, %s135
        %s137 = smul.u32 60, %s9
      $region28: #{tpu_custom_call.1} parent=23 // pred_fallthru
        _
    $region24: #{tpu_custom_call.1} parent=5 // pred_fallthru
      _
    %p138 = scmp.le.s32.totalorder 1, %s9
    %p139 = scmp.lt.s32.totalorder %s9, 3
    %p140 = pnand %p138, %p139
    %p141 = pneg %p140
    // Predicated region
    $region29: #{tpu_custom_call.1} parent=5 // pred_check
      _
    $region30: #{tpu_custom_call.1} parent=5 // pred_check_branch
      %143 = sbr.rel (%p140) target = $region32
    $region31: #{tpu_custom_call.1} parent=5 // pred_region
      %s144 = ssub.s32 %s9, 1
      %p145 = pneg %p30
      %p146 = pneg %p27
      %p147 = pneg %p51
      %p148 = pneg %p48
      %s149 = smul.u32 60, %s14
      %p150 = scmp.lt.s32.totalorder %s149, 119
      %s151 = scalar_select %p150, %s149, 119
      %s152 = smul.addr %s151, 2
      %s153 = smul.addr %s152, 4
      %s154 = scalar_lea.vmem %s2, %s153
      %p155 = pneg %p77
      %p156 = pneg %p74
      %p157 = pneg %p103
      %p158 = pneg %p100
      %s159 = smul.u32 60, %s14
      %p160 = scmp.lt.s32.totalorder %s159, 119
      %s161 = scalar_select %p160, %s159, 119
      %s162 = smul.addr %s161, 2
      %s163 = smul.addr %s162, 4
      %s164 = scalar_lea.vmem %s3, %s163
      %s165 = smul.u32 60, %s14
      %p166 = scmp.lt.s32.totalorder %s165, 119
      %s167 = scalar_select %p166, %s165, 119
      %s168 = smul.addr %s167, 2
      %s169 = smul.addr %s168, 4
      %s170 = scalar_lea.vmem %s2, %s169
      %s171 = smul.u32 60, %s14
      %s172 = smul.u32 60, %s14
      %p173 = scmp.lt.s32.totalorder %s172, 119
      %s174 = scalar_select %p173, %s172, 119
      %s175 = smul.addr %s174, 2
      %s176 = smul.addr %s175, 4
      %s177 = scalar_lea.vmem %s3, %s176
      %s178 = smul.u32 60, %s14
      %v180 = vld [vmem:[%s0] sm:$0xff]
      %v181 = vld [vmem:[%s0 + $0x8] sm:$0xff]
      %v182 = vld [vmem:[%s0 + $0x10] sm:$0xff]
      %v183 = vld [vmem:[%s0 + $0x18] sm:$0xff]
      %v184 = vld [vmem:[%s0 + $0x20] sm:$0xff]
      %v185 = vld [vmem:[%s0 + $0x28] sm:$0xff]
      %v186 = vld [vmem:[%s0 + $0x30] sm:$0xff]
      %v187 = vld [vmem:[%s0 + $0x38] sm:$0xff]
      %v188 = vld [vmem:[%s0 + $0x40] sm:$0xff]
      %v189 = vld [vmem:[%s0 + $0x48] sm:$0xff]
      %v190 = vld [vmem:[%s0 + $0x50] sm:$0xff]
      %v191 = vld [vmem:[%s0 + $0x58] sm:$0xff]
      %v192 = vld [vmem:[%s0 + $0x60] sm:$0xff]
      %v193 = vld [vmem:[%s0 + $0x68] sm:$0xff]
      %v194 = vld [vmem:[%s0 + $0x70] sm:$0xff]
      %v195 = vld [vmem:[%s0 + $0x78] sm:$0xff]
      %v196 = vld [vmem:[%s0 + $0x80] sm:$0xff]
      %v197 = vld [vmem:[%s0 + $0x88] sm:$0xff]
      %v198 = vld [vmem:[%s0 + $0x90] sm:$0xff]
      %v199 = vld [vmem:[%s0 + $0x98] sm:$0xff]
      %v200 = vld [vmem:[%s0 + $0xa0] sm:$0xff]
      %v201 = vld [vmem:[%s0 + $0xa8] sm:$0xff]
      %v202 = vld [vmem:[%s0 + $0xb0] sm:$0xff]
      %v203 = vld [vmem:[%s0 + $0xb8] sm:$0xff]
      %v204 = vld [vmem:[%s0 + $0xc0] sm:$0xff]
      %v205 = vld [vmem:[%s0 + $0xc8] sm:$0xff]
      %v206 = vld [vmem:[%s0 + $0xd0] sm:$0xff]
      %v207 = vld [vmem:[%s0 + $0xd8] sm:$0xff]
      %v208 = vld [vmem:[%s0 + $0xe0] sm:$0xff]
      %v209 = vld [vmem:[%s0 + $0xe8] sm:$0xff]
      %v210 = vld [vmem:[%s0 + $0xf0] sm:$0xff]
      %v211 = vld [vmem:[%s0 + $0xf8] sm:$0xff]
      %v212 = vld [vmem:[%s0 + $0x100] sm:$0xff]
      %v213 = vld [vmem:[%s0 + $0x108] sm:$0xff]
      %v214 = vld [vmem:[%s0 + $0x110] sm:$0xff]
      %v215 = vld [vmem:[%s0 + $0x118] sm:$0xff]
      %v216 = vld [vmem:[%s0 + $0x120] sm:$0xff]
      %v217 = vld [vmem:[%s0 + $0x128] sm:$0xff]
      %v218 = vld [vmem:[%s0 + $0x130] sm:$0xff]
      %v219 = vld [vmem:[%s0 + $0x138] sm:$0xff]
      %v220 = vld [vmem:[%s1] sm:$0xff]
      %v221 = vld [vmem:[%s1 + $0x8] sm:$0xff]
      %v222 = vld [vmem:[%s1 + $0x10] sm:$0xff]
      %v223 = vld [vmem:[%s1 + $0x18] sm:$0xff]
      %v224 = vld [vmem:[%s1 + $0x20] sm:$0xff]
      %v225 = vld [vmem:[%s1 + $0x28] sm:$0xff]
      %v226 = vld [vmem:[%s1 + $0x30] sm:$0xff]
      %v227 = vld [vmem:[%s1 + $0x38] sm:$0xff]
      %v228 = vld [vmem:[%s1 + $0x40] sm:$0xff]
      %v229 = vld [vmem:[%s1 + $0x48] sm:$0xff]
      %v230 = vld [vmem:[%s1 + $0x50] sm:$0xff]
      %v231 = vld [vmem:[%s1 + $0x58] sm:$0xff]
      %v232 = vld [vmem:[%s1 + $0x60] sm:$0xff]
      %v233 = vld [vmem:[%s1 + $0x68] sm:$0xff]
      %v234 = vld [vmem:[%s1 + $0x70] sm:$0xff]
      %v235 = vld [vmem:[%s1 + $0x78] sm:$0xff]
      %v236 = vld [vmem:[%s1 + $0x80] sm:$0xff]
      %v237 = vld [vmem:[%s1 + $0x88] sm:$0xff]
      %v238 = vld [vmem:[%s1 + $0x90] sm:$0xff]
      %v239 = vld [vmem:[%s1 + $0x98] sm:$0xff]
      %v240 = vld [vmem:[%s1 + $0xa0] sm:$0xff]
      %v241 = vld [vmem:[%s1 + $0xa8] sm:$0xff]
      %v242 = vld [vmem:[%s1 + $0xb0] sm:$0xff]
      %v243 = vld [vmem:[%s1 + $0xb8] sm:$0xff]
      %v244 = vld [vmem:[%s1 + $0xc0] sm:$0xff]
      %v245 = vld [vmem:[%s1 + $0xc8] sm:$0xff]
      %v246 = vld [vmem:[%s1 + $0xd0] sm:$0xff]
      %v247 = vld [vmem:[%s1 + $0xd8] sm:$0xff]
      %v248 = vld [vmem:[%s1 + $0xe0] sm:$0xff]
      %v249 = vld [vmem:[%s1 + $0xe8] sm:$0xff]
      %v250 = vld [vmem:[%s1 + $0xf0] sm:$0xff]
      %v251 = vld [vmem:[%s1 + $0xf8] sm:$0xff]
      %v252 = vld [vmem:[%s1 + $0x100] sm:$0xff]
      %v253 = vld [vmem:[%s1 + $0x108] sm:$0xff]
      %v254 = vld [vmem:[%s1 + $0x110] sm:$0xff]
      %v255 = vld [vmem:[%s1 + $0x118] sm:$0xff]
      %v256 = vld [vmem:[%s1 + $0x120] sm:$0xff]
      %v257 = vld [vmem:[%s1 + $0x128] sm:$0xff]
      %v258 = vld [vmem:[%s1 + $0x130] sm:$0xff]
      %v259 = vld [vmem:[%s1 + $0x138] sm:$0xff]
      %v260 = vadd.f32 %v180, %v220
      %v261 = vadd.f32 %v181, %v221
      %v262 = vadd.f32 %v182, %v222
      %v263 = vadd.f32 %v183, %v223
      %v264 = vadd.f32 %v184, %v224
      %v265 = vadd.f32 %v185, %v225
      %v266 = vadd.f32 %v186, %v226
      %v267 = vadd.f32 %v187, %v227
      %v268 = vadd.f32 %v188, %v228
      %v269 = vadd.f32 %v189, %v229
      %v270 = vadd.f32 %v190, %v230
      %v271 = vadd.f32 %v191, %v231
      %v272 = vadd.f32 %v192, %v232
      %v273 = vadd.f32 %v193, %v233
      %v274 = vadd.f32 %v194, %v234
      %v275 = vadd.f32 %v195, %v235
      %v276 = vadd.f32 %v196, %v236
      %v277 = vadd.f32 %v197, %v237
      %v278 = vadd.f32 %v198, %v238
      %v279 = vadd.f32 %v199, %v239
      %v280 = vadd.f32 %v200, %v240
      %v281 = vadd.f32 %v201, %v241
      %v282 = vadd.f32 %v202, %v242
      %v283 = vadd.f32 %v203, %v243
      %v284 = vadd.f32 %v204, %v244
      %v285 = vadd.f32 %v205, %v245
      %v286 = vadd.f32 %v206, %v246
      %v287 = vadd.f32 %v207, %v247
      %v288 = vadd.f32 %v208, %v248
      %v289 = vadd.f32 %v209, %v249
      %v290 = vadd.f32 %v210, %v250
      %v291 = vadd.f32 %v211, %v251
      %v292 = vadd.f32 %v212, %v252
      %v293 = vadd.f32 %v213, %v253
      %v294 = vadd.f32 %v214, %v254
      %v295 = vadd.f32 %v215, %v255
      %v296 = vadd.f32 %v216, %v256
      %v297 = vadd.f32 %v217, %v257
      %v298 = vadd.f32 %v218, %v258
      %v299 = vadd.f32 %v219, %v259
      %v300 = vpack.c.bf16 %v262, %v260
      %v301 = vpack.c.bf16 %v263, %v261
      %v302 = vpack.c.bf16 %v266, %v264
      %v303 = vpack.c.bf16 %v267, %v265
      %v304 = vpack.c.bf16 %v270, %v268
      %v305 = vpack.c.bf16 %v271, %v269
      %v306 = vpack.c.bf16 %v274, %v272
      %v307 = vpack.c.bf16 %v275, %v273
      %v308 = vpack.c.bf16 %v278, %v276
      %v309 = vpack.c.bf16 %v279, %v277
      %v310 = vpack.c.bf16 %v282, %v280
      %v311 = vpack.c.bf16 %v283, %v281
      %v312 = vpack.c.bf16 %v286, %v284
      %v313 = vpack.c.bf16 %v287, %v285
      %v314 = vpack.c.bf16 %v290, %v288
      %v315 = vpack.c.bf16 %v291, %v289
      %v316 = vpack.c.bf16 %v294, %v292
      %v317 = vpack.c.bf16 %v295, %v293
      %v318 = vpack.c.bf16 %v298, %v296
      %v319 = vpack.c.bf16 %v299, %v297
      %v320 = vld [vmem:[%s170] sm:$0xff]
      %v321 = vld [vmem:[%s170 + $0x8] sm:$0xff]
      %v322 = vld [vmem:[%s170 + $0x10] sm:$0xff]
      %v323 = vld [vmem:[%s170 + $0x18] sm:$0xff]
      %v324 = vld [vmem:[%s170 + $0x20] sm:$0xff]
      %v325 = vld [vmem:[%s170 + $0x28] sm:$0xff]
      %v326 = vld [vmem:[%s170 + $0x30] sm:$0xff]
      %v327 = vld [vmem:[%s170 + $0x38] sm:$0xff]
      %v328 = vld [vmem:[%s170 + $0x40] sm:$0xff]
      %v329 = vld [vmem:[%s170 + $0x48] sm:$0xff]
      %v330 = vld [vmem:[%s170 + $0x50] sm:$0xff]
      %v331 = vld [vmem:[%s170 + $0x58] sm:$0xff]
      %v332 = vld [vmem:[%s170 + $0x60] sm:$0xff]
      %v333 = vld [vmem:[%s170 + $0x68] sm:$0xff]
      %v334 = vld [vmem:[%s170 + $0x70] sm:$0xff]
      %v335 = vld [vmem:[%s170 + $0x78] sm:$0xff]
      %v336 = vld [vmem:[%s170 + $0x80] sm:$0xff]
      %v337 = vld [vmem:[%s170 + $0x88] sm:$0xff]
      %v338 = vld [vmem:[%s170 + $0x90] sm:$0xff]
      %v339 = vld [vmem:[%s170 + $0x98] sm:$0xff]
      %v340 = vld [vmem:[%s170 + $0xa0] sm:$0xff]
      %v341 = vld [vmem:[%s170 + $0xa8] sm:$0xff]
      %v342 = vld [vmem:[%s170 + $0xb0] sm:$0xff]
      %v343 = vld [vmem:[%s170 + $0xb8] sm:$0xff]
      %v344 = vld [vmem:[%s170 + $0xc0] sm:$0xff]
      %v345 = vld [vmem:[%s170 + $0xc8] sm:$0xff]
      %v346 = vld [vmem:[%s170 + $0xd0] sm:$0xff]
      %v347 = vld [vmem:[%s170 + $0xd8] sm:$0xff]
      %v348 = vld [vmem:[%s170 + $0xe0] sm:$0xff]
      %v349 = vld [vmem:[%s170 + $0xe8] sm:$0xff]
      %v350 = vld [vmem:[%s170 + $0xf0] sm:$0xff]
      %v351 = vld [vmem:[%s170 + $0xf8] sm:$0xff]
      %v352 = vld [vmem:[%s170 + $0x100] sm:$0xff]
      %v353 = vld [vmem:[%s170 + $0x108] sm:$0xff]
      %v354 = vld [vmem:[%s170 + $0x110] sm:$0xff]
      %v355 = vld [vmem:[%s170 + $0x118] sm:$0xff]
      %v356 = vld [vmem:[%s170 + $0x120] sm:$0xff]
      %v357 = vld [vmem:[%s170 + $0x128] sm:$0xff]
      %v358 = vld [vmem:[%s170 + $0x130] sm:$0xff]
      %v359 = vld [vmem:[%s170 + $0x138] sm:$0xff]
      %v360 = vld [vmem:[%s170 + $0x140] sm:$0xff]
      %v361 = vld [vmem:[%s170 + $0x148] sm:$0xff]
      %v362 = vld [vmem:[%s170 + $0x150] sm:$0xff]
      %v363 = vld [vmem:[%s170 + $0x158] sm:$0xff]
      %v364 = vld [vmem:[%s170 + $0x160] sm:$0xff]
      %v365 = vld [vmem:[%s170 + $0x168] sm:$0xff]
      %v366 = vld [vmem:[%s170 + $0x170] sm:$0xff]
      %v367 = vld [vmem:[%s170 + $0x178] sm:$0xff]
      %v368 = vld [vmem:[%s170 + $0x180] sm:$0xff]
      %v369 = vld [vmem:[%s170 + $0x188] sm:$0xff]
      %v370 = vld [vmem:[%s170 + $0x190] sm:$0xff]
      %v371 = vld [vmem:[%s170 + $0x198] sm:$0xff]
      %v372 = vld [vmem:[%s170 + $0x1a0] sm:$0xff]
      %v373 = vld [vmem:[%s170 + $0x1a8] sm:$0xff]
      %v374 = vld [vmem:[%s170 + $0x1b0] sm:$0xff]
      %v375 = vld [vmem:[%s170 + $0x1b8] sm:$0xff]
      %v376 = vld [vmem:[%s170 + $0x1c0] sm:$0xff]
      %v377 = vld [vmem:[%s170 + $0x1c8] sm:$0xff]
      %v378 = vld [vmem:[%s170 + $0x1d0] sm:$0xff]
      %v379 = vld [vmem:[%s170 + $0x1d8] sm:$0xff]
      %v440 = vunpack.c.l.b16 %v320
      %v441 = vunpack.c.h.b16 %v320
      %v442 = vunpack.c.l.b16 %v321
      %v443 = vunpack.c.h.b16 %v321
      %v444 = vunpack.c.l.b16 %v322
      %v445 = vunpack.c.h.b16 %v322
      %v446 = vunpack.c.l.b16 %v323
      %v447 = vunpack.c.h.b16 %v323
      %v448 = vunpack.c.l.b16 %v324
      %v449 = vunpack.c.h.b16 %v324
      %v450 = vunpack.c.l.b16 %v325
      %v451 = vunpack.c.h.b16 %v325
      %v452 = vunpack.c.l.b16 %v326
      %v453 = vunpack.c.h.b16 %v326
      %v454 = vunpack.c.l.b16 %v327
      %v455 = vunpack.c.h.b16 %v327
      %v456 = vunpack.c.l.b16 %v328
      %v457 = vunpack.c.h.b16 %v328
      %v458 = vunpack.c.l.b16 %v329
      %v459 = vunpack.c.h.b16 %v329
      %v460 = vunpack.c.l.b16 %v330
      %v461 = vunpack.c.h.b16 %v330
      %v462 = vunpack.c.l.b16 %v331
      %v463 = vunpack.c.h.b16 %v331
      %v464 = vunpack.c.l.b16 %v332
      %v465 = vunpack.c.h.b16 %v332
      %v466 = vunpack.c.l.b16 %v333
      %v467 = vunpack.c.h.b16 %v333
      %v468 = vunpack.c.l.b16 %v334
      %v469 = vunpack.c.h.b16 %v334
      %v470 = vunpack.c.l.b16 %v335
      %v471 = vunpack.c.h.b16 %v335
      %v472 = vunpack.c.l.b16 %v336
      %v473 = vunpack.c.h.b16 %v336
      %v474 = vunpack.c.l.b16 %v337
      %v475 = vunpack.c.h.b16 %v337
      %v476 = vunpack.c.l.b16 %v338
      %v477 = vunpack.c.h.b16 %v338
      %v478 = vunpack.c.l.b16 %v339
      %v479 = vunpack.c.h.b16 %v339
      %v480 = vunpack.c.l.b16 %v340
      %v481 = vunpack.c.h.b16 %v340
      %v482 = vunpack.c.l.b16 %v341
      %v483 = vunpack.c.h.b16 %v341
      %v484 = vunpack.c.l.b16 %v342
      %v485 = vunpack.c.h.b16 %v342
      %v486 = vunpack.c.l.b16 %v343
      %v487 = vunpack.c.h.b16 %v343
      %v488 = vunpack.c.l.b16 %v344
      %v489 = vunpack.c.h.b16 %v344
      %v490 = vunpack.c.l.b16 %v345
      %v491 = vunpack.c.h.b16 %v345
      %v492 = vunpack.c.l.b16 %v346
      %v493 = vunpack.c.h.b16 %v346
      %v494 = vunpack.c.l.b16 %v347
      %v495 = vunpack.c.h.b16 %v347
      %v496 = vunpack.c.l.b16 %v348
      %v497 = vunpack.c.h.b16 %v348
      %v498 = vunpack.c.l.b16 %v349
      %v499 = vunpack.c.h.b16 %v349
      %v500 = vunpack.c.l.b16 %v350
      %v501 = vunpack.c.h.b16 %v350
      %v502 = vunpack.c.l.b16 %v351
      %v503 = vunpack.c.h.b16 %v351
      %v504 = vunpack.c.l.b16 %v352
      %v505 = vunpack.c.h.b16 %v352
      %v506 = vunpack.c.l.b16 %v353
      %v507 = vunpack.c.h.b16 %v353
      %v508 = vunpack.c.l.b16 %v354
      %v509 = vunpack.c.h.b16 %v354
      %v510 = vunpack.c.l.b16 %v355
      %v511 = vunpack.c.h.b16 %v355
      %v512 = vunpack.c.l.b16 %v356
      %v513 = vunpack.c.h.b16 %v356
      %v514 = vunpack.c.l.b16 %v357
      %v515 = vunpack.c.h.b16 %v357
      %v516 = vunpack.c.l.b16 %v358
      %v517 = vunpack.c.h.b16 %v358
      %v518 = vunpack.c.l.b16 %v359
      %v519 = vunpack.c.h.b16 %v359
      %v520 = vunpack.c.l.b16 %v360
      %v521 = vunpack.c.h.b16 %v360
      %v522 = vunpack.c.l.b16 %v361
      %v523 = vunpack.c.h.b16 %v361
      %v524 = vunpack.c.l.b16 %v362
      %v525 = vunpack.c.h.b16 %v362
      %v526 = vunpack.c.l.b16 %v363
      %v527 = vunpack.c.h.b16 %v363
      %v528 = vunpack.c.l.b16 %v364
      %v529 = vunpack.c.h.b16 %v364
      %v530 = vunpack.c.l.b16 %v365
      %v531 = vunpack.c.h.b16 %v365
      %v532 = vunpack.c.l.b16 %v366
      %v533 = vunpack.c.h.b16 %v366
      %v534 = vunpack.c.l.b16 %v367
      %v535 = vunpack.c.h.b16 %v367
      %v536 = vunpack.c.l.b16 %v368
      %v537 = vunpack.c.h.b16 %v368
      %v538 = vunpack.c.l.b16 %v369
      %v539 = vunpack.c.h.b16 %v369
      %v540 = vunpack.c.l.b16 %v370
      %v541 = vunpack.c.h.b16 %v370
      %v542 = vunpack.c.l.b16 %v371
      %v543 = vunpack.c.h.b16 %v371
      %v544 = vunpack.c.l.b16 %v372
      %v545 = vunpack.c.h.b16 %v372
      %v546 = vunpack.c.l.b16 %v373
      %v547 = vunpack.c.h.b16 %v373
      %v548 = vunpack.c.l.b16 %v374
      %v549 = vunpack.c.h.b16 %v374
      %v550 = vunpack.c.l.b16 %v375
      %v551 = vunpack.c.h.b16 %v375
      %v552 = vunpack.c.l.b16 %v376
      %v553 = vunpack.c.h.b16 %v376
      %v554 = vunpack.c.l.b16 %v377
      %v555 = vunpack.c.h.b16 %v377
      %v556 = vunpack.c.l.b16 %v378
      %v557 = vunpack.c.h.b16 %v378
      %v558 = vunpack.c.l.b16 %v379
      %v559 = vunpack.c.h.b16 %v379
      %v560 = vpack.c.b16 %v442, %v440
      %v561 = vpack.c.b16 %v443, %v441
      %v562 = vpack.c.b16 %v446, %v444
      %v563 = vpack.c.b16 %v447, %v445
      %v564 = vpack.c.b16 %v450, %v448
      %v565 = vpack.c.b16 %v451, %v449
      %v566 = vpack.c.b16 %v454, %v452
      %v567 = vpack.c.b16 %v455, %v453
      %v568 = vpack.c.b16 %v458, %v456
      %v569 = vpack.c.b16 %v459, %v457
      %v570 = vpack.c.b16 %v462, %v460
      %v571 = vpack.c.b16 %v463, %v461
      %v572 = vpack.c.b16 %v466, %v464
      %v573 = vpack.c.b16 %v467, %v465
      %v574 = vpack.c.b16 %v470, %v468
      %v575 = vpack.c.b16 %v471, %v469
      %v576 = vpack.c.b16 %v474, %v472
      %v577 = vpack.c.b16 %v475, %v473
      %v578 = vpack.c.b16 %v478, %v476
      %v579 = vpack.c.b16 %v479, %v477
      %v580 = vpack.c.b16 %v482, %v480
      %v581 = vpack.c.b16 %v483, %v481
      %v582 = vpack.c.b16 %v486, %v484
      %v583 = vpack.c.b16 %v487, %v485
      %v584 = vpack.c.b16 %v490, %v488
      %v585 = vpack.c.b16 %v491, %v489
      %v586 = vpack.c.b16 %v494, %v492
      %v587 = vpack.c.b16 %v495, %v493
      %v588 = vpack.c.b16 %v498, %v496
      %v589 = vpack.c.b16 %v499, %v497
      %v590 = vpack.c.b16 %v502, %v500
      %v591 = vpack.c.b16 %v503, %v501
      %v592 = vpack.c.b16 %v506, %v504
      %v593 = vpack.c.b16 %v507, %v505
      %v594 = vpack.c.b16 %v510, %v508
      %v595 = vpack.c.b16 %v511, %v509
      %v596 = vpack.c.b16 %v514, %v512
      %v597 = vpack.c.b16 %v515, %v513
      %v598 = vpack.c.b16 %v518, %v516
      %v599 = vpack.c.b16 %v519, %v517
      %v600 = vpack.c.b16 %v522, %v520
      %v601 = vpack.c.b16 %v523, %v521
      %v602 = vpack.c.b16 %v526, %v524
      %v603 = vpack.c.b16 %v527, %v525
      %v604 = vpack.c.b16 %v530, %v528
      %v605 = vpack.c.b16 %v531, %v529
      %v606 = vpack.c.b16 %v534, %v532
      %v607 = vpack.c.b16 %v535, %v533
      %v608 = vpack.c.b16 %v538, %v536
      %v609 = vpack.c.b16 %v539, %v537
      %v610 = vpack.c.b16 %v542, %v540
      %v611 = vpack.c.b16 %v543, %v541
      %v612 = vpack.c.b16 %v546, %v544
      %v613 = vpack.c.b16 %v547, %v545
      %v614 = vpack.c.b16 %v550, %v548
      %v615 = vpack.c.b16 %v551, %v549
      %v616 = vpack.c.b16 %v554, %v552
      %v617 = vpack.c.b16 %v555, %v553
      %v618 = vpack.c.b16 %v558, %v556
      %v619 = vpack.c.b16 %v559, %v557
      %vm650 = vcmask 261120
      %v652 = vsel %vm650, %v561, 0
      %v655 = vsel %vm650, %v563, 0
      %v658 = vsel %vm650, %v565, 0
      %v661 = vsel %vm650, %v567, 0
      %v664 = vsel %vm650, %v569, 0
      %v667 = vsel %vm650, %v571, 0
      %v670 = vsel %vm650, %v573, 0
      %v673 = vsel %vm650, %v575, 0
      %v676 = vsel %vm650, %v577, 0
      %v679 = vsel %vm650, %v579, 0
      %v682 = vsel %vm650, %v581, 0
      %v685 = vsel %vm650, %v583, 0
      %v688 = vsel %vm650, %v585, 0
      %v691 = vsel %vm650, %v587, 0
      %v694 = vsel %vm650, %v589, 0
      %v697 = vsel %vm650, %v591, 0
      %v700 = vsel %vm650, %v593, 0
      %v703 = vsel %vm650, %v595, 0
      %v706 = vsel %vm650, %v597, 0
      %v709 = vsel %vm650, %v599, 0
      %v712 = vsel %vm650, %v601, 0
      %v715 = vsel %vm650, %v603, 0
      %v718 = vsel %vm650, %v605, 0
      %v721 = vsel %vm650, %v607, 0
      %v724 = vsel %vm650, %v609, 0
      %v727 = vsel %vm650, %v611, 0
      %v730 = vsel %vm650, %v613, 0
      %v733 = vsel %vm650, %v615, 0
      %v736 = vsel %vm650, %v617, 0
      %v739 = vsel %vm650, %v619, 0
      %741 = vmatpush.bf16.msra.mxu0 %v314
      %742 = vmatpush.bf16.msra.mxu0 %v312
      %743 = vmatpush.bf16.msra.mxu0 %v310
      %744 = vmatpush.bf16.msra.mxu0 %v308
      %745 = vmatpush.bf16.msra.mxu0 %v306
      %746 = vmatpush.bf16.msra.mxu0 %v304
      %747 = vmatpush.bf16.msra.mxu0 %v302
      %748 = vmatpush.bf16.msra.mxu0 %v300
      %749 = vmatmul.bf16.gmra.mxu0 %v560
      %v750 = vpop.f32.mrf.mxu0
      %v751 = vadd.f32 0.0, %v750
      %v752 = vpop.f32.mrf.mxu0
      %v753 = vadd.f32 0.0, %v752
      %754 = vmatmul.bf16.gmra.mxu0 %v562
      %v755 = vpop.f32.mrf.mxu0
      %v756 = vadd.f32 0.0, %v755
      %v757 = vpop.f32.mrf.mxu0
      %v758 = vadd.f32 0.0, %v757
      %759 = vmatmul.bf16.gmra.mxu0 %v564
      %v760 = vpop.f32.mrf.mxu0
      %v761 = vadd.f32 0.0, %v760
      %v762 = vpop.f32.mrf.mxu0
      %v763 = vadd.f32 0.0, %v762
      %764 = vmatmul.bf16.gmra.mxu0 %v566
      %v765 = vpop.f32.mrf.mxu0
      %v766 = vadd.f32 0.0, %v765
      %v767 = vpop.f32.mrf.mxu0
      %v768 = vadd.f32 0.0, %v767
      %769 = vmatmul.bf16.gmra.mxu0 %v568
      %v770 = vpop.f32.mrf.mxu0
      %v771 = vadd.f32 0.0, %v770
      %v772 = vpop.f32.mrf.mxu0
      %v773 = vadd.f32 0.0, %v772
      %774 = vmatmul.bf16.gmra.mxu0 %v570
      %v775 = vpop.f32.mrf.mxu0
      %v776 = vadd.f32 0.0, %v775
      %v777 = vpop.f32.mrf.mxu0
      %v778 = vadd.f32 0.0, %v777
      %779 = vmatmul.bf16.gmra.mxu0 %v572
      %v780 = vpop.f32.mrf.mxu0
      %v781 = vadd.f32 0.0, %v780
      %v782 = vpop.f32.mrf.mxu0
      %v783 = vadd.f32 0.0, %v782
      %784 = vmatmul.bf16.gmra.mxu0 %v574
      %v785 = vpop.f32.mrf.mxu0
      %v786 = vadd.f32 0.0, %v785
      %v787 = vpop.f32.mrf.mxu0
      %v788 = vadd.f32 0.0, %v787
      %789 = vmatmul.bf16.gmra.mxu0 %v576
      %v790 = vpop.f32.mrf.mxu0
      %v791 = vadd.f32 0.0, %v790
      %v792 = vpop.f32.mrf.mxu0
      %v793 = vadd.f32 0.0, %v792
      %794 = vmatmul.bf16.gmra.mxu0 %v578
      %v795 = vpop.f32.mrf.mxu0
      %v796 = vadd.f32 0.0, %v795
      %v797 = vpop.f32.mrf.mxu0
      %v798 = vadd.f32 0.0, %v797
      %799 = vmatmul.bf16.gmra.mxu0 %v580
      %v800 = vpop.f32.mrf.mxu0
      %v801 = vadd.f32 0.0, %v800
      %v802 = vpop.f32.mrf.mxu0
      %v803 = vadd.f32 0.0, %v802
      %804 = vmatmul.bf16.gmra.mxu0 %v582
      %v805 = vpop.f32.mrf.mxu0
      %v806 = vadd.f32 0.0, %v805
      %v807 = vpop.f32.mrf.mxu0
      %v808 = vadd.f32 0.0, %v807
      %809 = vmatmul.bf16.gmra.mxu0 %v584
      %v810 = vpop.f32.mrf.mxu0
      %v811 = vadd.f32 0.0, %v810
      %v812 = vpop.f32.mrf.mxu0
      %v813 = vadd.f32 0.0, %v812
      %814 = vmatmul.bf16.gmra.mxu0 %v586
      %v815 = vpop.f32.mrf.mxu0
      %v816 = vadd.f32 0.0, %v815
      %v817 = vpop.f32.mrf.mxu0
      %v818 = vadd.f32 0.0, %v817
      %819 = vmatmul.bf16.gmra.mxu0 %v588
      %v820 = vpop.f32.mrf.mxu0
      %v821 = vadd.f32 0.0, %v820
      %v822 = vpop.f32.mrf.mxu0
      %v823 = vadd.f32 0.0, %v822
      %824 = vmatmul.bf16.gmra.mxu0 %v590
      %v825 = vpop.f32.mrf.mxu0
      %v826 = vadd.f32 0.0, %v825
      %v827 = vpop.f32.mrf.mxu0
      %v828 = vadd.f32 0.0, %v827
      %829 = vmatmul.bf16.gmra.mxu0 %v592
      %v830 = vpop.f32.mrf.mxu0
      %v831 = vadd.f32 0.0, %v830
      %v832 = vpop.f32.mrf.mxu0
      %v833 = vadd.f32 0.0, %v832
      %834 = vmatmul.bf16.gmra.mxu0 %v594
      %v835 = vpop.f32.mrf.mxu0
      %v836 = vadd.f32 0.0, %v835
      %v837 = vpop.f32.mrf.mxu0
      %v838 = vadd.f32 0.0, %v837
      %839 = vmatmul.bf16.gmra.mxu0 %v596
      %v840 = vpop.f32.mrf.mxu0
      %v841 = vadd.f32 0.0, %v840
      %v842 = vpop.f32.mrf.mxu0
      %v843 = vadd.f32 0.0, %v842
      %844 = vmatmul.bf16.gmra.mxu0 %v598
      %v845 = vpop.f32.mrf.mxu0
      %v846 = vadd.f32 0.0, %v845
      %v847 = vpop.f32.mrf.mxu0
      %v848 = vadd.f32 0.0, %v847
      %849 = vmatmul.bf16.gmra.mxu0 %v600
      %v850 = vpop.f32.mrf.mxu0
      %v851 = vadd.f32 0.0, %v850
      %v852 = vpop.f32.mrf.mxu0
      %v853 = vadd.f32 0.0, %v852
      %854 = vmatmul.bf16.gmra.mxu0 %v602
      %v855 = vpop.f32.mrf.mxu0
      %v856 = vadd.f32 0.0, %v855
      %v857 = vpop.f32.mrf.mxu0
      %v858 = vadd.f32 0.0, %v857
      %859 = vmatmul.bf16.gmra.mxu0 %v604
      %v860 = vpop.f32.mrf.mxu0
      %v861 = vadd.f32 0.0, %v860
      %v862 = vpop.f32.mrf.mxu0
      %v863 = vadd.f32 0.0, %v862
      %864 = vmatmul.bf16.gmra.mxu0 %v606
      %v865 = vpop.f32.mrf.mxu0
      %v866 = vadd.f32 0.0, %v865
      %v867 = vpop.f32.mrf.mxu0
      %v868 = vadd.f32 0.0, %v867
      %869 = vmatmul.bf16.gmra.mxu0 %v608
      %v870 = vpop.f32.mrf.mxu0
      %v871 = vadd.f32 0.0, %v870
      %v872 = vpop.f32.mrf.mxu0
      %v873 = vadd.f32 0.0, %v872
      %874 = vmatmul.bf16.gmra.mxu0 %v610
      %v875 = vpop.f32.mrf.mxu0
      %v876 = vadd.f32 0.0, %v875
      %v877 = vpop.f32.mrf.mxu0
      %v878 = vadd.f32 0.0, %v877
      %879 = vmatmul.bf16.gmra.mxu0 %v612
      %v880 = vpop.f32.mrf.mxu0
      %v881 = vadd.f32 0.0, %v880
      %v882 = vpop.f32.mrf.mxu0
      %v883 = vadd.f32 0.0, %v882
      %884 = vmatmul.bf16.gmra.mxu0 %v614
      %v885 = vpop.f32.mrf.mxu0
      %v886 = vadd.f32 0.0, %v885
      %v887 = vpop.f32.mrf.mxu0
      %v888 = vadd.f32 0.0, %v887
      %889 = vmatmul.bf16.gmra.mxu0 %v616
      %v890 = vpop.f32.mrf.mxu0
      %v891 = vadd.f32 0.0, %v890
      %v892 = vpop.f32.mrf.mxu0
      %v893 = vadd.f32 0.0, %v892
      %894 = vmatmul.bf16.gmra.mxu0 %v618
      %v895 = vpop.f32.mrf.mxu0
      %v896 = vadd.f32 0.0, %v895
      %v897 = vpop.f32.mrf.mxu0
      %v898 = vadd.f32 0.0, %v897
      %899 = vdwg.mxu0
      %900 = vmatpush.bf16.msra.mxu0 0
      %901 = vmatpush.bf16.msra.mxu0 0
      %902 = vmatpush.bf16.msra.mxu0 0
      %903 = vmatpush.bf16.msra.mxu0 0
      %904 = vmatpush.bf16.msra.mxu0 0
      %905 = vmatpush.bf16.msra.mxu0 0
      %906 = vmatpush.bf16.msra.mxu0 %v318
      %907 = vmatpush.bf16.msra.mxu0 %v316
      %908 = vmatmul.bf16.gmra.mxu0 %v652
      %v909 = vpop.f32.mrf.mxu0
      %v910 = vadd.f32 %v751, %v909
      %v911 = vpop.f32.mrf.mxu0
      %v912 = vadd.f32 %v753, %v911
      %913 = vmatmul.bf16.gmra.mxu0 %v655
      %v914 = vpop.f32.mrf.mxu0
      %v915 = vadd.f32 %v756, %v914
      %v916 = vpop.f32.mrf.mxu0
      %v917 = vadd.f32 %v758, %v916
      %918 = vmatmul.bf16.gmra.mxu0 %v658
      %v919 = vpop.f32.mrf.mxu0
      %v920 = vadd.f32 %v761, %v919
      %v921 = vpop.f32.mrf.mxu0
      %v922 = vadd.f32 %v763, %v921
      %923 = vmatmul.bf16.gmra.mxu0 %v661
      %v924 = vpop.f32.mrf.mxu0
      %v925 = vadd.f32 %v766, %v924
      %v926 = vpop.f32.mrf.mxu0
      %v927 = vadd.f32 %v768, %v926
      %928 = vmatmul.bf16.gmra.mxu0 %v664
      %v929 = vpop.f32.mrf.mxu0
      %v930 = vadd.f32 %v771, %v929
      %v931 = vpop.f32.mrf.mxu0
      %v932 = vadd.f32 %v773, %v931
      %933 = vmatmul.bf16.gmra.mxu0 %v667
      %v934 = vpop.f32.mrf.mxu0
      %v935 = vadd.f32 %v776, %v934
      %v936 = vpop.f32.mrf.mxu0
      %v937 = vadd.f32 %v778, %v936
      %938 = vmatmul.bf16.gmra.mxu0 %v670
      %v939 = vpop.f32.mrf.mxu0
      %v940 = vadd.f32 %v781, %v939
      %v941 = vpop.f32.mrf.mxu0
      %v942 = vadd.f32 %v783, %v941
      %943 = vmatmul.bf16.gmra.mxu0 %v673
      %v944 = vpop.f32.mrf.mxu0
      %v945 = vadd.f32 %v786, %v944
      %v946 = vpop.f32.mrf.mxu0
      %v947 = vadd.f32 %v788, %v946
      %948 = vmatmul.bf16.gmra.mxu0 %v676
      %v949 = vpop.f32.mrf.mxu0
      %v950 = vadd.f32 %v791, %v949
      %v951 = vpop.f32.mrf.mxu0
      %v952 = vadd.f32 %v793, %v951
      %953 = vmatmul.bf16.gmra.mxu0 %v679
      %v954 = vpop.f32.mrf.mxu0
      %v955 = vadd.f32 %v796, %v954
      %v956 = vpop.f32.mrf.mxu0
      %v957 = vadd.f32 %v798, %v956
      %958 = vmatmul.bf16.gmra.mxu0 %v682
      %v959 = vpop.f32.mrf.mxu0
      %v960 = vadd.f32 %v801, %v959
      %v961 = vpop.f32.mrf.mxu0
      %v962 = vadd.f32 %v803, %v961
      %963 = vmatmul.bf16.gmra.mxu0 %v685
      %v964 = vpop.f32.mrf.mxu0
      %v965 = vadd.f32 %v806, %v964
      %v966 = vpop.f32.mrf.mxu0
      %v967 = vadd.f32 %v808, %v966
      %968 = vmatmul.bf16.gmra.mxu0 %v688
      %v969 = vpop.f32.mrf.mxu0
      %v970 = vadd.f32 %v811, %v969
      %v971 = vpop.f32.mrf.mxu0
      %v972 = vadd.f32 %v813, %v971
      %973 = vmatmul.bf16.gmra.mxu0 %v691
      %v974 = vpop.f32.mrf.mxu0
      %v975 = vadd.f32 %v816, %v974
      %v976 = vpop.f32.mrf.mxu0
      %v977 = vadd.f32 %v818, %v976
      %978 = vmatmul.bf16.gmra.mxu0 %v694
      %v979 = vpop.f32.mrf.mxu0
      %v980 = vadd.f32 %v821, %v979
      %v981 = vpop.f32.mrf.mxu0
      %v982 = vadd.f32 %v823, %v981
      %983 = vmatmul.bf16.gmra.mxu0 %v697
      %v984 = vpop.f32.mrf.mxu0
      %v985 = vadd.f32 %v826, %v984
      %v986 = vpop.f32.mrf.mxu0
      %v987 = vadd.f32 %v828, %v986
      %988 = vmatmul.bf16.gmra.mxu0 %v700
      %v989 = vpop.f32.mrf.mxu0
      %v990 = vadd.f32 %v831, %v989
      %v991 = vpop.f32.mrf.mxu0
      %v992 = vadd.f32 %v833, %v991
      %993 = vmatmul.bf16.gmra.mxu0 %v703
      %v994 = vpop.f32.mrf.mxu0
      %v995 = vadd.f32 %v836, %v994
      %v996 = vpop.f32.mrf.mxu0
      %v997 = vadd.f32 %v838, %v996
      %998 = vmatmul.bf16.gmra.mxu0 %v706
      %v999 = vpop.f32.mrf.mxu0
      %v1000 = vadd.f32 %v841, %v999
      %v1001 = vpop.f32.mrf.mxu0
      %v1002 = vadd.f32 %v843, %v1001
      %1003 = vmatmul.bf16.gmra.mxu0 %v709
      %v1004 = vpop.f32.mrf.mxu0
      %v1005 = vadd.f32 %v846, %v1004
      %v1006 = vpop.f32.mrf.mxu0
      %v1007 = vadd.f32 %v848, %v1006
      %1008 = vmatmul.bf16.gmra.mxu0 %v712
      %v1009 = vpop.f32.mrf.mxu0
      %v1010 = vadd.f32 %v851, %v1009
      %v1011 = vpop.f32.mrf.mxu0
      %v1012 = vadd.f32 %v853, %v1011
      %1013 = vmatmul.bf16.gmra.mxu0 %v715
      %v1014 = vpop.f32.mrf.mxu0
      %v1015 = vadd.f32 %v856, %v1014
      %v1016 = vpop.f32.mrf.mxu0
      %v1017 = vadd.f32 %v858, %v1016
      %1018 = vmatmul.bf16.gmra.mxu0 %v718
      %v1019 = vpop.f32.mrf.mxu0
      %v1020 = vadd.f32 %v861, %v1019
      %v1021 = vpop.f32.mrf.mxu0
      %v1022 = vadd.f32 %v863, %v1021
      %1023 = vmatmul.bf16.gmra.mxu0 %v721
      %v1024 = vpop.f32.mrf.mxu0
      %v1025 = vadd.f32 %v866, %v1024
      %v1026 = vpop.f32.mrf.mxu0
      %v1027 = vadd.f32 %v868, %v1026
      %1028 = vmatmul.bf16.gmra.mxu0 %v724
      %v1029 = vpop.f32.mrf.mxu0
      %v1030 = vadd.f32 %v871, %v1029
      %v1031 = vpop.f32.mrf.mxu0
      %v1032 = vadd.f32 %v873, %v1031
      %1033 = vmatmul.bf16.gmra.mxu0 %v727
      %v1034 = vpop.f32.mrf.mxu0
      %v1035 = vadd.f32 %v876, %v1034
      %v1036 = vpop.f32.mrf.mxu0
      %v1037 = vadd.f32 %v878, %v1036
      %1038 = vmatmul.bf16.gmra.mxu0 %v730
      %v1039 = vpop.f32.mrf.mxu0
      %v1040 = vadd.f32 %v881, %v1039
      %v1041 = vpop.f32.mrf.mxu0
      %v1042 = vadd.f32 %v883, %v1041
      %1043 = vmatmul.bf16.gmra.mxu0 %v733
      %v1044 = vpop.f32.mrf.mxu0
      %v1045 = vadd.f32 %v886, %v1044
      %v1046 = vpop.f32.mrf.mxu0
      %v1047 = vadd.f32 %v888, %v1046
      %1048 = vmatmul.bf16.gmra.mxu0 %v736
      %v1049 = vpop.f32.mrf.mxu0
      %v1050 = vadd.f32 %v891, %v1049
      %v1051 = vpop.f32.mrf.mxu0
      %v1052 = vadd.f32 %v893, %v1051
      %1053 = vmatmul.bf16.gmra.mxu0 %v739
      %v1054 = vpop.f32.mrf.mxu0
      %v1055 = vadd.f32 %v896, %v1054
      %v1056 = vpop.f32.mrf.mxu0
      %v1057 = vadd.f32 %v898, %v1056
      %1058 = vdwg.mxu0
      %1059 = vmatpush.bf16.msra.mxu0 %v315
      %1060 = vmatpush.bf16.msra.mxu0 %v313
      %1061 = vmatpush.bf16.msra.mxu0 %v311
      %1062 = vmatpush.bf16.msra.mxu0 %v309
      %1063 = vmatpush.bf16.msra.mxu0 %v307
      %1064 = vmatpush.bf16.msra.mxu0 %v305
      %1065 = vmatpush.bf16.msra.mxu0 %v303
      %1066 = vmatpush.bf16.msra.mxu0 %v301
      %1067 = vmatmul.bf16.gmra.mxu0 %v560
      %v1068 = vpop.f32.mrf.mxu0
      %v1069 = vadd.f32 0.0, %v1068
      %v1070 = vpop.f32.mrf.mxu0
      %v1071 = vadd.f32 0.0, %v1070
      %1072 = vmatmul.bf16.gmra.mxu0 %v562
      %v1073 = vpop.f32.mrf.mxu0
      %v1074 = vadd.f32 0.0, %v1073
      %v1075 = vpop.f32.mrf.mxu0
      %v1076 = vadd.f32 0.0, %v1075
      %1077 = vmatmul.bf16.gmra.mxu0 %v564
      %v1078 = vpop.f32.mrf.mxu0
      %v1079 = vadd.f32 0.0, %v1078
      %v1080 = vpop.f32.mrf.mxu0
      %v1081 = vadd.f32 0.0, %v1080
      %1082 = vmatmul.bf16.gmra.mxu0 %v566
      %v1083 = vpop.f32.mrf.mxu0
      %v1084 = vadd.f32 0.0, %v1083
      %v1085 = vpop.f32.mrf.mxu0
      %v1086 = vadd.f32 0.0, %v1085
      %1087 = vmatmul.bf16.gmra.mxu0 %v568
      %v1088 = vpop.f32.mrf.mxu0
      %v1089 = vadd.f32 0.0, %v1088
      %v1090 = vpop.f32.mrf.mxu0
      %v1091 = vadd.f32 0.0, %v1090
      %1092 = vmatmul.bf16.gmra.mxu0 %v570
      %v1093 = vpop.f32.mrf.mxu0
      %v1094 = vadd.f32 0.0, %v1093
      %v1095 = vpop.f32.mrf.mxu0
      %v1096 = vadd.f32 0.0, %v1095
      %1097 = vmatmul.bf16.gmra.mxu0 %v572
      %v1098 = vpop.f32.mrf.mxu0
      %v1099 = vadd.f32 0.0, %v1098
      %v1100 = vpop.f32.mrf.mxu0
      %v1101 = vadd.f32 0.0, %v1100
      %1102 = vmatmul.bf16.gmra.mxu0 %v574
      %v1103 = vpop.f32.mrf.mxu0
      %v1104 = vadd.f32 0.0, %v1103
      %v1105 = vpop.f32.mrf.mxu0
      %v1106 = vadd.f32 0.0, %v1105
      %1107 = vmatmul.bf16.gmra.mxu0 %v576
      %v1108 = vpop.f32.mrf.mxu0
      %v1109 = vadd.f32 0.0, %v1108
      %v1110 = vpop.f32.mrf.mxu0
      %v1111 = vadd.f32 0.0, %v1110
      %1112 = vmatmul.bf16.gmra.mxu0 %v578
      %v1113 = vpop.f32.mrf.mxu0
      %v1114 = vadd.f32 0.0, %v1113
      %v1115 = vpop.f32.mrf.mxu0
      %v1116 = vadd.f32 0.0, %v1115
      %1117 = vmatmul.bf16.gmra.mxu0 %v580
      %v1118 = vpop.f32.mrf.mxu0
      %v1119 = vadd.f32 0.0, %v1118
      %v1120 = vpop.f32.mrf.mxu0
      %v1121 = vadd.f32 0.0, %v1120
      %1122 = vmatmul.bf16.gmra.mxu0 %v582
      %v1123 = vpop.f32.mrf.mxu0
      %v1124 = vadd.f32 0.0, %v1123
      %v1125 = vpop.f32.mrf.mxu0
      %v1126 = vadd.f32 0.0, %v1125
      %1127 = vmatmul.bf16.gmra.mxu0 %v584
      %v1128 = vpop.f32.mrf.mxu0
      %v1129 = vadd.f32 0.0, %v1128
      %v1130 = vpop.f32.mrf.mxu0
      %v1131 = vadd.f32 0.0, %v1130
      %1132 = vmatmul.bf16.gmra.mxu0 %v586
      %v1133 = vpop.f32.mrf.mxu0
      %v1134 = vadd.f32 0.0, %v1133
      %v1135 = vpop.f32.mrf.mxu0
      %v1136 = vadd.f32 0.0, %v1135
      %1137 = vmatmul.bf16.gmra.mxu0 %v588
      %v1138 = vpop.f32.mrf.mxu0
      %v1139 = vadd.f32 0.0, %v1138
      %v1140 = vpop.f32.mrf.mxu0
      %v1141 = vadd.f32 0.0, %v1140
      %1142 = vmatmul.bf16.gmra.mxu0 %v590
      %v1143 = vpop.f32.mrf.mxu0
      %v1144 = vadd.f32 0.0, %v1143
      %v1145 = vpop.f32.mrf.mxu0
      %v1146 = vadd.f32 0.0, %v1145
      %1147 = vmatmul.bf16.gmra.mxu0 %v592
      %v1148 = vpop.f32.mrf.mxu0
      %v1149 = vadd.f32 0.0, %v1148
      %v1150 = vpop.f32.mrf.mxu0
      %v1151 = vadd.f32 0.0, %v1150
      %1152 = vmatmul.bf16.gmra.mxu0 %v594
      %v1153 = vpop.f32.mrf.mxu0
      %v1154 = vadd.f32 0.0, %v1153
      %v1155 = vpop.f32.mrf.mxu0
      %v1156 = vadd.f32 0.0, %v1155
      %1157 = vmatmul.bf16.gmra.mxu0 %v596
      %v1158 = vpop.f32.mrf.mxu0
      %v1159 = vadd.f32 0.0, %v1158
      %v1160 = vpop.f32.mrf.mxu0
      %v1161 = vadd.f32 0.0, %v1160
      %1162 = vmatmul.bf16.gmra.mxu0 %v598
      %v1163 = vpop.f32.mrf.mxu0
      %v1164 = vadd.f32 0.0, %v1163
      %v1165 = vpop.f32.mrf.mxu0
      %v1166 = vadd.f32 0.0, %v1165
      %1167 = vmatmul.bf16.gmra.mxu0 %v600
      %v1168 = vpop.f32.mrf.mxu0
      %v1169 = vadd.f32 0.0, %v1168
      %v1170 = vpop.f32.mrf.mxu0
      %v1171 = vadd.f32 0.0, %v1170
      %1172 = vmatmul.bf16.gmra.mxu0 %v602
      %v1173 = vpop.f32.mrf.mxu0
      %v1174 = vadd.f32 0.0, %v1173
      %v1175 = vpop.f32.mrf.mxu0
      %v1176 = vadd.f32 0.0, %v1175
      %1177 = vmatmul.bf16.gmra.mxu0 %v604
      %v1178 = vpop.f32.mrf.mxu0
      %v1179 = vadd.f32 0.0, %v1178
      %v1180 = vpop.f32.mrf.mxu0
      %v1181 = vadd.f32 0.0, %v1180
      %1182 = vmatmul.bf16.gmra.mxu0 %v606
      %v1183 = vpop.f32.mrf.mxu0
      %v1184 = vadd.f32 0.0, %v1183
      %v1185 = vpop.f32.mrf.mxu0
      %v1186 = vadd.f32 0.0, %v1185
      %1187 = vmatmul.bf16.gmra.mxu0 %v608
      %v1188 = vpop.f32.mrf.mxu0
      %v1189 = vadd.f32 0.0, %v1188
      %v1190 = vpop.f32.mrf.mxu0
      %v1191 = vadd.f32 0.0, %v1190
      %1192 = vmatmul.bf16.gmra.mxu0 %v610
      %v1193 = vpop.f32.mrf.mxu0
      %v1194 = vadd.f32 0.0, %v1193
      %v1195 = vpop.f32.mrf.mxu0
      %v1196 = vadd.f32 0.0, %v1195
      %1197 = vmatmul.bf16.gmra.mxu0 %v612
      %v1198 = vpop.f32.mrf.mxu0
      %v1199 = vadd.f32 0.0, %v1198
      %v1200 = vpop.f32.mrf.mxu0
      %v1201 = vadd.f32 0.0, %v1200
      %1202 = vmatmul.bf16.gmra.mxu0 %v614
      %v1203 = vpop.f32.mrf.mxu0
      %v1204 = vadd.f32 0.0, %v1203
      %v1205 = vpop.f32.mrf.mxu0
      %v1206 = vadd.f32 0.0, %v1205
      %1207 = vmatmul.bf16.gmra.mxu0 %v616
      %v1208 = vpop.f32.mrf.mxu0
      %v1209 = vadd.f32 0.0, %v1208
      %v1210 = vpop.f32.mrf.mxu0
      %v1211 = vadd.f32 0.0, %v1210
      %1212 = vmatmul.bf16.gmra.mxu0 %v618
      %v1213 = vpop.f32.mrf.mxu0
      %v1214 = vadd.f32 0.0, %v1213
      %v1215 = vpop.f32.mrf.mxu0
      %v1216 = vadd.f32 0.0, %v1215
      %1217 = vdwg.mxu0
      %1218 = vmatpush.bf16.msra.mxu0 0
      %1219 = vmatpush.bf16.msra.mxu0 0
      %1220 = vmatpush.bf16.msra.mxu0 0
      %1221 = vmatpush.bf16.msra.mxu0 0
      %1222 = vmatpush.bf16.msra.mxu0 0
      %1223 = vmatpush.bf16.msra.mxu0 0
      %1224 = vmatpush.bf16.msra.mxu0 %v319
      %1225 = vmatpush.bf16.msra.mxu0 %v317
      %1226 = vmatmul.bf16.gmra.mxu0 %v652
      %v1227 = vpop.f32.mrf.mxu0
      %v1228 = vadd.f32 %v1069, %v1227
      %v1229 = vpop.f32.mrf.mxu0
      %v1230 = vadd.f32 %v1071, %v1229
      %1231 = vmatmul.bf16.gmra.mxu0 %v655
      %v1232 = vpop.f32.mrf.mxu0
      %v1233 = vadd.f32 %v1074, %v1232
      %v1234 = vpop.f32.mrf.mxu0
      %v1235 = vadd.f32 %v1076, %v1234
      %1236 = vmatmul.bf16.gmra.mxu0 %v658
      %v1237 = vpop.f32.mrf.mxu0
      %v1238 = vadd.f32 %v1079, %v1237
      %v1239 = vpop.f32.mrf.mxu0
      %v1240 = vadd.f32 %v1081, %v1239
      %1241 = vmatmul.bf16.gmra.mxu0 %v661
      %v1242 = vpop.f32.mrf.mxu0
      %v1243 = vadd.f32 %v1084, %v1242
      %v1244 = vpop.f32.mrf.mxu0
      %v1245 = vadd.f32 %v1086, %v1244
      %1246 = vmatmul.bf16.gmra.mxu0 %v664
      %v1247 = vpop.f32.mrf.mxu0
      %v1248 = vadd.f32 %v1089, %v1247
      %v1249 = vpop.f32.mrf.mxu0
      %v1250 = vadd.f32 %v1091, %v1249
      %1251 = vmatmul.bf16.gmra.mxu0 %v667
      %v1252 = vpop.f32.mrf.mxu0
      %v1253 = vadd.f32 %v1094, %v1252
      %v1254 = vpop.f32.mrf.mxu0
      %v1255 = vadd.f32 %v1096, %v1254
      %1256 = vmatmul.bf16.gmra.mxu0 %v670
      %v1257 = vpop.f32.mrf.mxu0
      %v1258 = vadd.f32 %v1099, %v1257
      %v1259 = vpop.f32.mrf.mxu0
      %v1260 = vadd.f32 %v1101, %v1259
      %1261 = vmatmul.bf16.gmra.mxu0 %v673
      %v1262 = vpop.f32.mrf.mxu0
      %v1263 = vadd.f32 %v1104, %v1262
      %v1264 = vpop.f32.mrf.mxu0
      %v1265 = vadd.f32 %v1106, %v1264
      %1266 = vmatmul.bf16.gmra.mxu0 %v676
      %v1267 = vpop.f32.mrf.mxu0
      %v1268 = vadd.f32 %v1109, %v1267
      %v1269 = vpop.f32.mrf.mxu0
      %v1270 = vadd.f32 %v1111, %v1269
      %1271 = vmatmul.bf16.gmra.mxu0 %v679
      %v1272 = vpop.f32.mrf.mxu0
      %v1273 = vadd.f32 %v1114, %v1272
      %v1274 = vpop.f32.mrf.mxu0
      %v1275 = vadd.f32 %v1116, %v1274
      %1276 = vmatmul.bf16.gmra.mxu0 %v682
      %v1277 = vpop.f32.mrf.mxu0
      %v1278 = vadd.f32 %v1119, %v1277
      %v1279 = vpop.f32.mrf.mxu0
      %v1280 = vadd.f32 %v1121, %v1279
      %1281 = vmatmul.bf16.gmra.mxu0 %v685
      %v1282 = vpop.f32.mrf.mxu0
      %v1283 = vadd.f32 %v1124, %v1282
      %v1284 = vpop.f32.mrf.mxu0
      %v1285 = vadd.f32 %v1126, %v1284
      %1286 = vmatmul.bf16.gmra.mxu0 %v688
      %v1287 = vpop.f32.mrf.mxu0
      %v1288 = vadd.f32 %v1129, %v1287
      %v1289 = vpop.f32.mrf.mxu0
      %v1290 = vadd.f32 %v1131, %v1289
      %1291 = vmatmul.bf16.gmra.mxu0 %v691
      %v1292 = vpop.f32.mrf.mxu0
      %v1293 = vadd.f32 %v1134, %v1292
      %v1294 = vpop.f32.mrf.mxu0
      %v1295 = vadd.f32 %v1136, %v1294
      %1296 = vmatmul.bf16.gmra.mxu0 %v694
      %v1297 = vpop.f32.mrf.mxu0
      %v1298 = vadd.f32 %v1139, %v1297
      %v1299 = vpop.f32.mrf.mxu0
      %v1300 = vadd.f32 %v1141, %v1299
      %1301 = vmatmul.bf16.gmra.mxu0 %v697
      %v1302 = vpop.f32.mrf.mxu0
      %v1303 = vadd.f32 %v1144, %v1302
      %v1304 = vpop.f32.mrf.mxu0
      %v1305 = vadd.f32 %v1146, %v1304
      %1306 = vmatmul.bf16.gmra.mxu0 %v700
      %v1307 = vpop.f32.mrf.mxu0
      %v1308 = vadd.f32 %v1149, %v1307
      %v1309 = vpop.f32.mrf.mxu0
      %v1310 = vadd.f32 %v1151, %v1309
      %1311 = vmatmul.bf16.gmra.mxu0 %v703
      %v1312 = vpop.f32.mrf.mxu0
      %v1313 = vadd.f32 %v1154, %v1312
      %v1314 = vpop.f32.mrf.mxu0
      %v1315 = vadd.f32 %v1156, %v1314
      %1316 = vmatmul.bf16.gmra.mxu0 %v706
      %v1317 = vpop.f32.mrf.mxu0
      %v1318 = vadd.f32 %v1159, %v1317
      %v1319 = vpop.f32.mrf.mxu0
      %v1320 = vadd.f32 %v1161, %v1319
      %1321 = vmatmul.bf16.gmra.mxu0 %v709
      %v1322 = vpop.f32.mrf.mxu0
      %v1323 = vadd.f32 %v1164, %v1322
      %v1324 = vpop.f32.mrf.mxu0
      %v1325 = vadd.f32 %v1166, %v1324
      %1326 = vmatmul.bf16.gmra.mxu0 %v712
      %v1327 = vpop.f32.mrf.mxu0
      %v1328 = vadd.f32 %v1169, %v1327
      %v1329 = vpop.f32.mrf.mxu0
      %v1330 = vadd.f32 %v1171, %v1329
      %1331 = vmatmul.bf16.gmra.mxu0 %v715
      %v1332 = vpop.f32.mrf.mxu0
      %v1333 = vadd.f32 %v1174, %v1332
      %v1334 = vpop.f32.mrf.mxu0
      %v1335 = vadd.f32 %v1176, %v1334
      %1336 = vmatmul.bf16.gmra.mxu0 %v718
      %v1337 = vpop.f32.mrf.mxu0
      %v1338 = vadd.f32 %v1179, %v1337
      %v1339 = vpop.f32.mrf.mxu0
      %v1340 = vadd.f32 %v1181, %v1339
      %1341 = vmatmul.bf16.gmra.mxu0 %v721
      %v1342 = vpop.f32.mrf.mxu0
      %v1343 = vadd.f32 %v1184, %v1342
      %v1344 = vpop.f32.mrf.mxu0
      %v1345 = vadd.f32 %v1186, %v1344
      %1346 = vmatmul.bf16.gmra.mxu0 %v724
      %v1347 = vpop.f32.mrf.mxu0
      %v1348 = vadd.f32 %v1189, %v1347
      %v1349 = vpop.f32.mrf.mxu0
      %v1350 = vadd.f32 %v1191, %v1349
      %1351 = vmatmul.bf16.gmra.mxu0 %v727
      %v1352 = vpop.f32.mrf.mxu0
      %v1353 = vadd.f32 %v1194, %v1352
      %v1354 = vpop.f32.mrf.mxu0
      %v1355 = vadd.f32 %v1196, %v1354
      %1356 = vmatmul.bf16.gmra.mxu0 %v730
      %v1357 = vpop.f32.mrf.mxu0
      %v1358 = vadd.f32 %v1199, %v1357
      %v1359 = vpop.f32.mrf.mxu0
      %v1360 = vadd.f32 %v1201, %v1359
      %1361 = vmatmul.bf16.gmra.mxu0 %v733
      %v1362 = vpop.f32.mrf.mxu0
      %v1363 = vadd.f32 %v1204, %v1362
      %v1364 = vpop.f32.mrf.mxu0
      %v1365 = vadd.f32 %v1206, %v1364
      %1366 = vmatmul.bf16.gmra.mxu0 %v736
      %v1367 = vpop.f32.mrf.mxu0
      %v1368 = vadd.f32 %v1209, %v1367
      %v1369 = vpop.f32.mrf.mxu0
      %v1370 = vadd.f32 %v1211, %v1369
      %1371 = vmatmul.bf16.gmra.mxu0 %v739
      %v1372 = vpop.f32.mrf.mxu0
      %v1373 = vadd.f32 %v1214, %v1372
      %v1374 = vpop.f32.mrf.mxu0
      %v1375 = vadd.f32 %v1216, %v1374
      %1376 = vdwg.mxu0
      %v1377 = vpack.c.bf16 %v1228, %v910
      %v1378 = vpack.c.bf16 %v1230, %v912
      %v1379 = vpack.c.bf16 %v1233, %v915
      %v1380 = vpack.c.bf16 %v1235, %v917
      %v1381 = vpack.c.bf16 %v1238, %v920
      %v1382 = vpack.c.bf16 %v1240, %v922
      %v1383 = vpack.c.bf16 %v1243, %v925
      %v1384 = vpack.c.bf16 %v1245, %v927
      %v1385 = vpack.c.bf16 %v1248, %v930
      %v1386 = vpack.c.bf16 %v1250, %v932
      %v1387 = vpack.c.bf16 %v1253, %v935
      %v1388 = vpack.c.bf16 %v1255, %v937
      %v1389 = vpack.c.bf16 %v1258, %v940
      %v1390 = vpack.c.bf16 %v1260, %v942
      %v1391 = vpack.c.bf16 %v1263, %v945
      %v1392 = vpack.c.bf16 %v1265, %v947
      %v1393 = vpack.c.bf16 %v1268, %v950
      %v1394 = vpack.c.bf16 %v1270, %v952
      %v1395 = vpack.c.bf16 %v1273, %v955
      %v1396 = vpack.c.bf16 %v1275, %v957
      %v1397 = vpack.c.bf16 %v1278, %v960
      %v1398 = vpack.c.bf16 %v1280, %v962
      %v1399 = vpack.c.bf16 %v1283, %v965
      %v1400 = vpack.c.bf16 %v1285, %v967
      %v1401 = vpack.c.bf16 %v1288, %v970
      %v1402 = vpack.c.bf16 %v1290, %v972
      %v1403 = vpack.c.bf16 %v1293, %v975
      %v1404 = vpack.c.bf16 %v1295, %v977
      %v1405 = vpack.c.bf16 %v1298, %v980
      %v1406 = vpack.c.bf16 %v1300, %v982
      %v1407 = vpack.c.bf16 %v1303, %v985
      %v1408 = vpack.c.bf16 %v1305, %v987
      %v1409 = vpack.c.bf16 %v1308, %v990
      %v1410 = vpack.c.bf16 %v1310, %v992
      %v1411 = vpack.c.bf16 %v1313, %v995
      %v1412 = vpack.c.bf16 %v1315, %v997
      %v1413 = vpack.c.bf16 %v1318, %v1000
      %v1414 = vpack.c.bf16 %v1320, %v1002
      %v1415 = vpack.c.bf16 %v1323, %v1005
      %v1416 = vpack.c.bf16 %v1325, %v1007
      %v1417 = vpack.c.bf16 %v1328, %v1010
      %v1418 = vpack.c.bf16 %v1330, %v1012
      %v1419 = vpack.c.bf16 %v1333, %v1015
      %v1420 = vpack.c.bf16 %v1335, %v1017
      %v1421 = vpack.c.bf16 %v1338, %v1020
      %v1422 = vpack.c.bf16 %v1340, %v1022
      %v1423 = vpack.c.bf16 %v1343, %v1025
      %v1424 = vpack.c.bf16 %v1345, %v1027
      %v1425 = vpack.c.bf16 %v1348, %v1030
      %v1426 = vpack.c.bf16 %v1350, %v1032
      %v1427 = vpack.c.bf16 %v1353, %v1035
      %v1428 = vpack.c.bf16 %v1355, %v1037
      %v1429 = vpack.c.bf16 %v1358, %v1040
      %v1430 = vpack.c.bf16 %v1360, %v1042
      %v1431 = vpack.c.bf16 %v1363, %v1045
      %v1432 = vpack.c.bf16 %v1365, %v1047
      %v1433 = vpack.c.bf16 %v1368, %v1050
      %v1434 = vpack.c.bf16 %v1370, %v1052
      %v1435 = vpack.c.bf16 %v1373, %v1055
      %v1436 = vpack.c.bf16 %v1375, %v1057
      %vm1437 = vcmask 1043456
      %vm1438 = vcmask 556036
      %vm1439 = vmor %vm1438, %vm1437
      %1440 = vst.msk [vmem:[%s177] sm:$0xff] %vm1439, %v1377
      %1441 = vst.msk [vmem:[%s177 + $0x8] sm:$0xff] %vm1439, %v1378
      %1442 = vst.msk [vmem:[%s177 + $0x10] sm:$0xff] %vm1439, %v1379
      %1443 = vst.msk [vmem:[%s177 + $0x18] sm:$0xff] %vm1439, %v1380
      %1444 = vst.msk [vmem:[%s177 + $0x20] sm:$0xff] %vm1439, %v1381
      %1445 = vst.msk [vmem:[%s177 + $0x28] sm:$0xff] %vm1439, %v1382
      %1446 = vst.msk [vmem:[%s177 + $0x30] sm:$0xff] %vm1439, %v1383
      %1447 = vst.msk [vmem:[%s177 + $0x38] sm:$0xff] %vm1439, %v1384
      %1448 = vst.msk [vmem:[%s177 + $0x40] sm:$0xff] %vm1439, %v1385
      %1449 = vst.msk [vmem:[%s177 + $0x48] sm:$0xff] %vm1439, %v1386
      %1450 = vst.msk [vmem:[%s177 + $0x50] sm:$0xff] %vm1439, %v1387
      %1451 = vst.msk [vmem:[%s177 + $0x58] sm:$0xff] %vm1439, %v1388
      %1452 = vst.msk [vmem:[%s177 + $0x60] sm:$0xff] %vm1439, %v1389
      %1453 = vst.msk [vmem:[%s177 + $0x68] sm:$0xff] %vm1439, %v1390
      %1454 = vst.msk [vmem:[%s177 + $0x70] sm:$0xff] %vm1439, %v1391
      %1455 = vst.msk [vmem:[%s177 + $0x78] sm:$0xff] %vm1439, %v1392
      %1456 = vst.msk [vmem:[%s177 + $0x80] sm:$0xff] %vm1439, %v1393
      %1457 = vst.msk [vmem:[%s177 + $0x88] sm:$0xff] %vm1439, %v1394
      %1458 = vst.msk [vmem:[%s177 + $0x90] sm:$0xff] %vm1439, %v1395
      %1459 = vst.msk [vmem:[%s177 + $0x98] sm:$0xff] %vm1439, %v1396
      %1460 = vst.msk [vmem:[%s177 + $0xa0] sm:$0xff] %vm1439, %v1397
      %1461 = vst.msk [vmem:[%s177 + $0xa8] sm:$0xff] %vm1439, %v1398
      %1462 = vst.msk [vmem:[%s177 + $0xb0] sm:$0xff] %vm1439, %v1399
      %1463 = vst.msk [vmem:[%s177 + $0xb8] sm:$0xff] %vm1439, %v1400
      %1464 = vst.msk [vmem:[%s177 + $0xc0] sm:$0xff] %vm1439, %v1401
      %1465 = vst.msk [vmem:[%s177 + $0xc8] sm:$0xff] %vm1439, %v1402
      %1466 = vst.msk [vmem:[%s177 + $0xd0] sm:$0xff] %vm1439, %v1403
      %1467 = vst.msk [vmem:[%s177 + $0xd8] sm:$0xff] %vm1439, %v1404
      %1468 = vst.msk [vmem:[%s177 + $0xe0] sm:$0xff] %vm1439, %v1405
      %1469 = vst.msk [vmem:[%s177 + $0xe8] sm:$0xff] %vm1439, %v1406
      %1470 = vst.msk [vmem:[%s177 + $0xf0] sm:$0xff] %vm1439, %v1407
      %1471 = vst.msk [vmem:[%s177 + $0xf8] sm:$0xff] %vm1439, %v1408
      %1472 = vst.msk [vmem:[%s177 + $0x100] sm:$0xff] %vm1439, %v1409
      %1473 = vst.msk [vmem:[%s177 + $0x108] sm:$0xff] %vm1439, %v1410
      %1474 = vst.msk [vmem:[%s177 + $0x110] sm:$0xff] %vm1439, %v1411
      %1475 = vst.msk [vmem:[%s177 + $0x118] sm:$0xff] %vm1439, %v1412
      %1476 = vst.msk [vmem:[%s177 + $0x120] sm:$0xff] %vm1439, %v1413
      %1477 = vst.msk [vmem:[%s177 + $0x128] sm:$0xff] %vm1439, %v1414
      %1478 = vst.msk [vmem:[%s177 + $0x130] sm:$0xff] %vm1439, %v1415
      %1479 = vst.msk [vmem:[%s177 + $0x138] sm:$0xff] %vm1439, %v1416
      %1480 = vst.msk [vmem:[%s177 + $0x140] sm:$0xff] %vm1439, %v1417
      %1481 = vst.msk [vmem:[%s177 + $0x148] sm:$0xff] %vm1439, %v1418
      %1482 = vst.msk [vmem:[%s177 + $0x150] sm:$0xff] %vm1439, %v1419
      %1483 = vst.msk [vmem:[%s177 + $0x158] sm:$0xff] %vm1439, %v1420
      %1484 = vst.msk [vmem:[%s177 + $0x160] sm:$0xff] %vm1439, %v1421
      %1485 = vst.msk [vmem:[%s177 + $0x168] sm:$0xff] %vm1439, %v1422
      %1486 = vst.msk [vmem:[%s177 + $0x170] sm:$0xff] %vm1439, %v1423
      %1487 = vst.msk [vmem:[%s177 + $0x178] sm:$0xff] %vm1439, %v1424
      %1488 = vst.msk [vmem:[%s177 + $0x180] sm:$0xff] %vm1439, %v1425
      %1489 = vst.msk [vmem:[%s177 + $0x188] sm:$0xff] %vm1439, %v1426
      %1490 = vst.msk [vmem:[%s177 + $0x190] sm:$0xff] %vm1439, %v1427
      %1491 = vst.msk [vmem:[%s177 + $0x198] sm:$0xff] %vm1439, %v1428
      %1492 = vst.msk [vmem:[%s177 + $0x1a0] sm:$0xff] %vm1439, %v1429
      %1493 = vst.msk [vmem:[%s177 + $0x1a8] sm:$0xff] %vm1439, %v1430
      %1494 = vst.msk [vmem:[%s177 + $0x1b0] sm:$0xff] %vm1439, %v1431
      %1495 = vst.msk [vmem:[%s177 + $0x1b8] sm:$0xff] %vm1439, %v1432
      %1496 = vst.msk [vmem:[%s177 + $0x1c0] sm:$0xff] %vm1439, %v1433
      %1497 = vst.msk [vmem:[%s177 + $0x1c8] sm:$0xff] %vm1439, %v1434
      %1498 = vst.msk [vmem:[%s177 + $0x1d0] sm:$0xff] %vm1439, %v1435
      %1499 = vst.msk [vmem:[%s177 + $0x1d8] sm:$0xff] %vm1439, %v1436
      %s1500 = smul.u32 60, %s14
      %p1501 = scmp.lt.s32.totalorder %s1500, 119
      %s1502 = scalar_select %p1501, %s1500, 119
      %s1503 = smul.addr %s1502, 2
      %s1504 = smul.addr %s1503, 4
      %s1505 = scalar_lea.vmem %s3, %s1504
      // Predicated region
      $region33: #{tpu_custom_call.1} parent=31 // pred_check
        %p1506 = pneg %p100
      $region34: #{tpu_custom_call.1} parent=31 // pred_check_branch
        %1508 = sbr.rel (%p1506) target = $region36
      $region35: #{tpu_custom_call.1} parent=31 // pred_region
        %s1509 = smul.u32 60, %s14
      $region36: #{tpu_custom_call.1} parent=31 // pred_fallthru
        _
    $region32: #{tpu_custom_call.1} parent=5 // pred_fallthru
      _
    %p1510 = scmp.le.s32.totalorder 2, %s9
    // Predicated region
    $region37: #{tpu_custom_call.1} parent=5 // pred_check
      %p1511 = pneg %p1510
    $region38: #{tpu_custom_call.1} parent=5 // pred_check_branch
      %1513 = sbr.rel (%p1511) target = $region40
    $region39: #{tpu_custom_call.1} parent=5 // pred_region
      %s1514 = ssub.s32 %s9, 2
      // Predicated region
      $region41: #{tpu_custom_call.1} parent=39 // pred_check
        %p1515 = pneg %p106
      $region42: #{tpu_custom_call.1} parent=39 // pred_check_branch
        %1517 = sbr.rel (%p1515) target = $region44
      $region43: #{tpu_custom_call.1} parent=39 // pred_region
        %s1518 = smul.u32 60, %s15
        %p1519 = scmp.lt.s32.totalorder %s1518, 119
        %s1520 = scalar_select %p1519, %s1518, 119
        %s1521 = smul.addr %s1520, 2
        %s1522 = smul.addr %s1521, 4
        %s1523 = scalar_lea.vmem %s3, %s1522
      $region44: #{tpu_custom_call.1} parent=39 // pred_fallthru
        _
    $region40: #{tpu_custom_call.1} parent=5 // pred_fallthru
      _
  $region6: #{tpu_custom_call.1} parent=0 // loop_footer
    %s13 = sadd.s32 1, %s9
  $region7: #{tpu_custom_call.1} parent=0 // loop_footer_branch
    %8 = sbr.rel target = $region3
  $region8: #{tpu_custom_call.1} parent=0 // loop_exit
    _

</llo_original>
